<compile_context>
chip_gen: v7x
topology: tpu7x:2x2x1
jax: 0.10.0
libtpu: 0.0.40
codegen_flags: <defaults>
</compile_context>

<pallas_src>
import jax
import jax.numpy as jnp
from jax.experimental import pallas as pl
from jax.experimental.pallas import tpu as pltpu

hidde_size_out = 8  # module-level constant, as in the PyTorch source


def actor_kernel(xt_ref, w1t_ref, b1t_ref, w2t_ref, b2t_ref, w3t_ref, b3t_ref,
                 out_ref):
    xt = xt_ref[...]                                   # (S, Bt) f32, feature-major
    w1t = w1t_ref[...]                                 # (H, 2)  f32

    # ---- layer 1 (K=2) on the VPU: two rank-1 outer products + bias ----
    h = w1t[:, 0:1] * xt[0:1, :] + w1t[:, 1:2] * xt[1:2, :] + b1t_ref[...]
    h = jnp.maximum(h, 0.0)                            # (H, Bt) f32

    # ---- layer 2 on the MXU: bf16 operands, f32 accumulation ----
    h = jnp.dot(w2t_ref[...], h.astype(jnp.bfloat16),
                preferred_element_type=jnp.float32) + b2t_ref[...]
    h = jnp.maximum(h, 0.0)                            # (H, Bt) f32

    # ---- discrete index -> one-hot (feature-major: V on the sublane axis) ----
    idx = xt[2:3, :].astype(jnp.int32)                 # (1, Bt) truncation == .long()
    H = h.shape[0]
    Vp = w3t_ref.shape[1] - H                          # padded vocab rows
    row_iota = jax.lax.broadcasted_iota(jnp.int32, (Vp, xt.shape[1]), 0)
    onehot = (row_iota == idx).astype(jnp.float32)     # (Vp, Bt)

    # ---- single fused tail matmul: (O, H+Vp) @ [h ; onehot] -> (O, Bt) ----
    hk = jnp.concatenate([h, onehot], axis=0).astype(jnp.bfloat16)   # (H+Vp, Bt)
    out = jnp.dot(w3t_ref[...], hk,
                  preferred_element_type=jnp.float32) + b3t_ref[...]
    out_ref[...] = out.astype(out_ref.dtype)           # lane-dense (O, Bt) store


def fuse_params(params):
    """Fold layer3 + output layer + embedding into one transposed tail weight."""
    w3o = params["w3"] @ params["wo"]                       # (H, O)
    embo = params["emb"] @ params["wo"]                     # (V, O)
    b3o = params["b3"] @ params["wo"] + params["bo"]        # (1, O)
    V = embo.shape[0]
    V_pad = ((V + 7) // 8) * 8                              # sublane-align the vocab rows
    if V_pad != V:
        embo = jnp.pad(embo, ((0, V_pad - V), (0, 0)))
    w3e = jnp.concatenate([w3o, embo], axis=0)              # (H+V_pad, O)
    return {
        "w1t": params["w1"].T,                              # (H, 2)       f32 (VPU)
        "b1t": params["b1"].T,                              # (H, 1)       f32
        "w2t": params["w2"].T.astype(jnp.bfloat16),         # (H, H)       bf16 (MXU)
        "b2t": params["b2"].T,                              # (H, 1)       f32
        "w3t": w3e.T.astype(jnp.bfloat16),                  # (O, H+V_pad) bf16 (MXU)
        "b3t": b3o.T,                                       # (O, 1)       f32
    }


def _pick_block_b(B):
    """Choose a lane-tile for the batch axis and the padded batch size."""
    if B < 256:
        return B, B                       # single full block (block == full dims)
    Bp = ((B + 255) // 256) * 256         # pad to a multiple of 256
    for cand in (2048, 1024, 512, 256, 128):
        if Bp % cand == 0 and Bp // cand >= 2:   # >=2 grid steps (v7x dual-TC)
            return cand, Bp
    return 128, Bp                        # unreachable (Bp is a multiple of 256)


def actor_net_forward(x, params, *, block_b=None):
    """x: (B, state_size) f32 with x[:, 2] the discrete index (like the PyTorch module).
    params: raw (unfused) parameter dict from init_params. Returns (B, out_size) f32."""
    fp = fuse_params(params)

    B, S = x.shape
    H = fp["w2t"].shape[0]
    O, HV = fp["w3t"].shape

    if block_b is None:
        block_b, Bp = _pick_block_b(B)
    else:
        Bp = pl.cdiv(B, block_b) * block_b
        assert block_b == Bp or block_b % 128 == 0, \
            "explicit block_b must be lane-aligned (multiple of 128) or cover the batch"

    # Feature-major input: one transpose, slicing + int cast happen inside the kernel.
    xt = x.T.astype(jnp.float32)                        # (S, B)
    if Bp != B:
        xt = jnp.pad(xt, ((0, 0), (0, Bp - B)))         # padded cols: idx 0 (valid), dropped later

    grid = (Bp // block_b,)
    batch_map = lambda i: (0, i)
    const_map = lambda i: (0, 0)

    in_specs = [
        pl.BlockSpec((S, block_b), batch_map),   # x^T
        pl.BlockSpec((H, 2), const_map),         # w1^T   (f32, VPU layer)
        pl.BlockSpec((H, 1), const_map),         # b1^T
        pl.BlockSpec((H, H), const_map),         # w2^T   (bf16)
        pl.BlockSpec((H, 1), const_map),         # b2^T
        pl.BlockSpec((O, HV), const_map),        # fused tail weight^T (bf16)
        pl.BlockSpec((O, 1), const_map),         # fused tail bias^T
    ]
    out_specs = pl.BlockSpec((O, block_b), batch_map)    # lane-dense out^T

    flops = 2 * Bp * (2 * H + H * H + HV * O)
    bytes_accessed = (4 * (S * Bp + O * Bp + 2 * H + 2 * H + O)
                      + 2 * (H * H + O * HV))
    cost = pl.CostEstimate(flops=flops, transcendentals=0,
                           bytes_accessed=bytes_accessed)

    out_t = pl.pallas_call(
        actor_kernel,
        out_shape=jax.ShapeDtypeStruct((O, Bp), jnp.float32),
        grid=grid,
        in_specs=in_specs,
        out_specs=out_specs,
        compiler_params=pltpu.CompilerParams(
            dimension_semantics=("parallel",)),
        cost_estimate=cost,
    )(xt, fp["w1t"], fp["b1t"], fp["w2t"], fp["b2t"], fp["w3t"], fp["b3t"])

    # Callers that can keep feature-major activations upstream may skip this transpose.
    return out_t[:, :B].T


def init_params(key, state_size, out_size, hidde_size, hidde_size_out, discr_size):
    """Deterministic synthetic init. Weights stored as (in, out) so y = x @ W + b
    (equivalent to PyTorch's y = x @ W.T + b with W of shape (out, in))."""
    in_size = state_size - 1  # == 2, matches conti_x = x[:, 0:2] (state_size must be 3)
    assert in_size == 2, "discrete branch hardcodes x[:, 0:2]; state_size must be 3"
    ks = jax.random.split(key, 8)
    s = 0.1
    return {
        "w1": s * jax.random.normal(ks[0], (in_size, hidde_size), jnp.float32),
        "b1": s * jax.random.normal(ks[1], (1, hidde_size), jnp.float32),
        "w2": s * jax.random.normal(ks[2], (hidde_size, hidde_size), jnp.float32),
        "b2": s * jax.random.normal(ks[3], (1, hidde_size), jnp.float32),
        "w3": s * jax.random.normal(ks[4], (hidde_size, hidde_size_out), jnp.float32),
        "b3": s * jax.random.normal(ks[5], (1, hidde_size_out), jnp.float32),
        "emb": s * jax.random.normal(ks[6], (discr_size, hidde_size_out), jnp.float32),
        "wo": s * jax.random.normal(ks[7], (hidde_size_out, out_size), jnp.float32),
        "bo": jnp.zeros((1, out_size), jnp.float32),
    }


def actor_net_reference(x, params):
    """Pure-JAX f32 reference mirroring the PyTorch forward (discrete branch, unfused)."""
    conti = x[:, 0:2]
    discr = x[:, 2].astype(jnp.int32)
    h = jax.nn.relu(conti @ params["w1"] + params["b1"])
    h = jax.nn.relu(h @ params["w2"] + params["b2"])
    h_conti = h @ params["w3"] + params["b3"]
    h_discr = params["emb"][discr]
    hx = h_conti + h_discr
    return hx @ params["wo"] + params["bo"]


if __name__ == "__main__":
    # Shapes consistent with the module: state_size=3 (2 continuous + 1 discrete index),
    # hidde_size=32, hidde_size_out=8 (module-level constant), out_size=4.
    B = 8
    state_size = 3
    out_size = 4
    hidde_size = 32
    discr_size = 10

    key = jax.random.PRNGKey(0)
    k_x, k_d, k_p, k_x2, k_d2 = jax.random.split(key, 5)

    conti_x = jax.random.normal(k_x, (B, 2), jnp.float32)
    discr_x = jax.random.randint(k_d, (B, 1), 0, discr_size).astype(jnp.float32)
    x = jnp.concatenate([conti_x, discr_x], axis=1)          # (B, state_size)

    params = init_params(k_p, state_size, out_size, hidde_size,
                         hidde_size_out, discr_size)

    out = jax.block_until_ready(actor_net_forward(x, params))
    ref = actor_net_reference(x, params)
    assert out.shape == (B, out_size)
    # bf16 MXU operands -> looser tolerance vs the f32 reference.
    assert jnp.allclose(out, ref, atol=2e-2, rtol=2e-2), "mismatch vs reference (small B)"

    # Also exercise the padded / multi-tile grid path (B=300 -> Bp=512, two 256-lane tiles).
    B2 = 300
    conti2 = jax.random.normal(k_x2, (B2, 2), jnp.float32)
    discr2 = jax.random.randint(k_d2, (B2, 1), 0, discr_size).astype(jnp.float32)
    x2 = jnp.concatenate([conti2, discr2], axis=1)
    out2 = jax.block_until_ready(actor_net_forward(x2, params))
    ref2 = actor_net_reference(x2, params)
    assert out2.shape == (B2, out_size)
    assert jnp.allclose(out2, ref2, atol=2e-2, rtol=2e-2), "mismatch vs reference (padded B)"

    # TODO(synk): the non-discrete branch (is_discr_state=False) and optional output
    # activations ('Tanh' etc.) are trivial variants of the same MLP kernel and are
    # not exercised here; multi-actor output packing (lane-dense out_size*num_agents)
    # is left to the serving caller.
    print("KERNEL_OK")
</pallas_src>

<mosaic_0001>
module attributes {stable_mosaic.version = 11 : i64} {
  func.func @actor_kernel(%arg0: i32, %arg1: memref<3x8xf32, #tpu.memory_space<vmem>>, %arg2: memref<32x2xf32, #tpu.memory_space<vmem>>, %arg3: memref<32x1xf32, #tpu.memory_space<vmem>>, %arg4: memref<32x32xbf16, #tpu.memory_space<vmem>>, %arg5: memref<32x1xf32, #tpu.memory_space<vmem>>, %arg6: memref<4x48xbf16, #tpu.memory_space<vmem>>, %arg7: memref<4x1xf32, #tpu.memory_space<vmem>>, %arg8: memref<4x8xf32, #tpu.memory_space<vmem>>) attributes {dimension_semantics = [#tpu.dimension_semantics<parallel>], iteration_bounds = array<i64: 1>, scalar_prefetch = 0 : i64, scratch_operands = 0 : i64, tpu.core_type = #tpu.core_type<tc>, window_params = [{transform_indices = @transform_0, window_bounds = array<i64: 3, 8>}, {pipeline_mode = #tpu.pipeline_mode<synchronous>, transform_indices = @transform_1, window_bounds = array<i64: 32, 2>}, {pipeline_mode = #tpu.pipeline_mode<synchronous>, transform_indices = @transform_2, window_bounds = array<i64: 32, 1>}, {pipeline_mode = #tpu.pipeline_mode<synchronous>, transform_indices = @transform_3, window_bounds = array<i64: 32, 32>}, {pipeline_mode = #tpu.pipeline_mode<synchronous>, transform_indices = @transform_4, window_bounds = array<i64: 32, 1>}, {pipeline_mode = #tpu.pipeline_mode<synchronous>, transform_indices = @transform_5, window_bounds = array<i64: 4, 48>}, {pipeline_mode = #tpu.pipeline_mode<synchronous>, transform_indices = @transform_6, window_bounds = array<i64: 4, 1>}, {transform_indices = @transform_7, window_bounds = array<i64: 4, 8>}]} {
    %c0 = arith.constant 0 : index
    %c0_0 = arith.constant 0 : index
    %0 = vector.load %arg1[%c0, %c0_0] : memref<3x8xf32, #tpu.memory_space<vmem>>, vector<3x8xf32>
    %c0_1 = arith.constant 0 : index
    %c0_2 = arith.constant 0 : index
    %1 = vector.load %arg2[%c0_1, %c0_2] : memref<32x2xf32, #tpu.memory_space<vmem>>, vector<32x2xf32>
    %2 = vector.extract_strided_slice %1 {offsets = [0, 0], sizes = [32, 1], strides = [1, 1]} : vector<32x2xf32> to vector<32x1xf32>
    %3 = vector.extract_strided_slice %0 {offsets = [0, 0], sizes = [1, 8], strides = [1, 1]} : vector<3x8xf32> to vector<1x8xf32>
    %4 = vector.broadcast %2 : vector<32x1xf32> to vector<32x8xf32>
    %5 = vector.broadcast %3 : vector<1x8xf32> to vector<32x8xf32>
    %6 = arith.mulf %4, %5 : vector<32x8xf32>
    %7 = vector.extract_strided_slice %1 {offsets = [0, 1], sizes = [32, 1], strides = [1, 1]} : vector<32x2xf32> to vector<32x1xf32>
    %8 = vector.extract_strided_slice %0 {offsets = [1, 0], sizes = [1, 8], strides = [1, 1]} : vector<3x8xf32> to vector<1x8xf32>
    %9 = vector.broadcast %7 : vector<32x1xf32> to vector<32x8xf32>
    %10 = vector.broadcast %8 : vector<1x8xf32> to vector<32x8xf32>
    %11 = arith.mulf %9, %10 : vector<32x8xf32>
    %12 = arith.addf %6, %11 : vector<32x8xf32>
    %c0_3 = arith.constant 0 : index
    %c0_4 = arith.constant 0 : index
    %13 = vector.load %arg3[%c0_3, %c0_4] : memref<32x1xf32, #tpu.memory_space<vmem>>, vector<32x1xf32>
    %14 = vector.broadcast %13 : vector<32x1xf32> to vector<32x8xf32>
    %15 = arith.addf %12, %14 : vector<32x8xf32>
    %cst = arith.constant 0.000000e+00 : f32
    %16 = vector.broadcast %cst : f32 to vector<32x8xf32>
    %17 = arith.maximumf %15, %16 : vector<32x8xf32>
    %c0_5 = arith.constant 0 : index
    %c0_6 = arith.constant 0 : index
    %18 = vector.load %arg4[%c0_5, %c0_6] : memref<32x32xbf16, #tpu.memory_space<vmem>>, vector<32x32xbf16>
    %19 = arith.truncf %17 : vector<32x8xf32> to vector<32x8xbf16>
    %cst_7 = arith.constant dense<0.000000e+00> : vector<32x8xf32>
    %20 = tpu.matmul %18, %19, %cst_7 {dimension_numbers = #tpu.dot_dimension_numbers<[1], [0], [0], [1], [0, 0, 1, 1], [], []>} : vector<32x32xbf16>, vector<32x8xbf16>, vector<32x8xf32> -> vector<32x8xf32>
    %c0_8 = arith.constant 0 : index
    %c0_9 = arith.constant 0 : index
    %21 = vector.load %arg5[%c0_8, %c0_9] : memref<32x1xf32, #tpu.memory_space<vmem>>, vector<32x1xf32>
    %22 = vector.broadcast %21 : vector<32x1xf32> to vector<32x8xf32>
    %23 = arith.addf %20, %22 : vector<32x8xf32>
    %cst_10 = arith.constant 0.000000e+00 : f32
    %24 = vector.broadcast %cst_10 : f32 to vector<32x8xf32>
    %25 = arith.maximumf %23, %24 : vector<32x8xf32>
    %26 = vector.extract_strided_slice %0 {offsets = [2, 0], sizes = [1, 8], strides = [1, 1]} : vector<3x8xf32> to vector<1x8xf32>
    %27 = arith.fptosi %26 : vector<1x8xf32> to vector<1x8xi32>
    %28 = tpu.iota {dimensions = array<i32: 0>} : vector<16x8xi32>
    %29 = vector.broadcast %27 : vector<1x8xi32> to vector<16x8xi32>
    %30 = arith.cmpi eq, %28, %29 : vector<16x8xi32>
    %31 = arith.extui %30 : vector<16x8xi1> to vector<16x8xi32>
    %32 = arith.sitofp %31 : vector<16x8xi32> to vector<16x8xf32>
    %33 = tpu.concatenate %25, %32 in 0 : vector<32x8xf32>, vector<16x8xf32> -> vector<48x8xf32>
    %34 = arith.truncf %33 : vector<48x8xf32> to vector<48x8xbf16>
    %c0_11 = arith.constant 0 : index
    %c0_12 = arith.constant 0 : index
    %35 = vector.load %arg6[%c0_11, %c0_12] : memref<4x48xbf16, #tpu.memory_space<vmem>>, vector<4x48xbf16>
    %cst_13 = arith.constant dense<0.000000e+00> : vector<4x8xf32>
    %36 = tpu.matmul %35, %34, %cst_13 {dimension_numbers = #tpu.dot_dimension_numbers<[1], [0], [0], [1], [0, 0, 1, 1], [], []>} : vector<4x48xbf16>, vector<48x8xbf16>, vector<4x8xf32> -> vector<4x8xf32>
    %c0_14 = arith.constant 0 : index
    %c0_15 = arith.constant 0 : index
    %37 = vector.load %arg7[%c0_14, %c0_15] : memref<4x1xf32, #tpu.memory_space<vmem>>, vector<4x1xf32>
    %38 = vector.broadcast %37 : vector<4x1xf32> to vector<4x8xf32>
    %39 = arith.addf %36, %38 : vector<4x8xf32>
    %c0_16 = arith.constant 0 : index
    %c0_17 = arith.constant 0 : index
    %40 = vector.load %arg8[%c0_16, %c0_17] : memref<4x8xf32, #tpu.memory_space<vmem>>, vector<4x8xf32>
    tpu.vector_store %arg8[%c0_16, %c0_17], %39 {strides = array<i32>} : memref<4x8xf32, #tpu.memory_space<vmem>>, vector<4x8xf32>,
    return
  }
  func.func @transform_0(%arg0: i32) -> (i32, i32) {
    %c0_i32 = arith.constant 0 : i32
    %c0_i32_0 = arith.constant 0 : i32
    return %c0_i32, %arg0 : i32, i32
  }
  func.func @transform_1(%arg0: i32) -> (i32, i32) {
    %c0_i32 = arith.constant 0 : i32
    %c0_i32_0 = arith.constant 0 : i32
    %c0_i32_1 = arith.constant 0 : i32
    return %c0_i32, %c0_i32_0 : i32, i32
  }
  func.func @transform_2(%arg0: i32) -> (i32, i32) {
    %c0_i32 = arith.constant 0 : i32
    %c0_i32_0 = arith.constant 0 : i32
    %c0_i32_1 = arith.constant 0 : i32
    return %c0_i32, %c0_i32_0 : i32, i32
  }
  func.func @transform_3(%arg0: i32) -> (i32, i32) {
    %c0_i32 = arith.constant 0 : i32
    %c0_i32_0 = arith.constant 0 : i32
    %c0_i32_1 = arith.constant 0 : i32
    return %c0_i32, %c0_i32_0 : i32, i32
  }
  func.func @transform_4(%arg0: i32) -> (i32, i32) {
    %c0_i32 = arith.constant 0 : i32
    %c0_i32_0 = arith.constant 0 : i32
    %c0_i32_1 = arith.constant 0 : i32
    return %c0_i32, %c0_i32_0 : i32, i32
  }
  func.func @transform_5(%arg0: i32) -> (i32, i32) {
    %c0_i32 = arith.constant 0 : i32
    %c0_i32_0 = arith.constant 0 : i32
    %c0_i32_1 = arith.constant 0 : i32
    return %c0_i32, %c0_i32_0 : i32, i32
  }
  func.func @transform_6(%arg0: i32) -> (i32, i32) {
    %c0_i32 = arith.constant 0 : i32
    %c0_i32_0 = arith.constant 0 : i32
    %c0_i32_1 = arith.constant 0 : i32
    return %c0_i32, %c0_i32_0 : i32, i32
  }
  func.func @transform_7(%arg0: i32) -> (i32, i32) {
    %c0_i32 = arith.constant 0 : i32
    %c0_i32_0 = arith.constant 0 : i32
    return %c0_i32, %arg0 : i32, i32
  }
}

</mosaic_0001>

<llo_original>
// kernel: tpu_custom_call.1
$region0: #{tpu_custom_call.1}
  #allocation0 [shape = 'u32[]', space=smem, size = 0x4, offset = 0x4, fixed_abs, tag = 'smem constant byte address 0x4 - core index']
  #allocation1 [shape = 'u32[144,128]{1,0:T(1,128)}', space=vmem, size = 0x12000, scoped, tag = 'internal scratch']
  %s0 = inlined_call_operand.vmem [shape: f32[3,8], index: 0, kind: input, shape index: {}]
  %s1 = inlined_call_operand.vmem [shape: f32[32,2], index: 1, kind: input, shape index: {}]
  %s2 = inlined_call_operand.vmem [shape: f32[32,1], index: 2, kind: input, shape index: {}]
  %s3 = inlined_call_operand.vmem [shape: bf16[32,32], index: 3, kind: input, shape index: {}]
  %s4 = inlined_call_operand.vmem [shape: f32[32,1], index: 4, kind: input, shape index: {}]
  %s5 = inlined_call_operand.vmem [shape: bf16[4,48], index: 5, kind: input, shape index: {}]
  %s6 = inlined_call_operand.vmem [shape: f32[4,1], index: 6, kind: input, shape index: {}]
  %s7 = inlined_call_operand.hbm [shape: f32[4,8], index: 7, kind: output, shape index: {}]
  %s8 = sld [smem:[#allocation0]]
  $region38: #{tpu_custom_call.1} parent=0
    _
  %s10 = ssub.s32 1, %s8
  %s11 = scalar_select 0, %s10, %s8
  $region1: #{tpu_custom_call.1} parent=0
    #allocation2 [shape = 'u8[2048]{0}', space=vmem, size = 0x800, scoped, tag = 'output window, operand 0, single buffered']
    #allocation3 [shape = 's32[1]{0}', space=sflag, size = 0x4, scoped, tag = 'scoped memory for tpu_custom_call.1']
    %12 = vsyncpa [#allocation3], 0
    // Predicated region
    $region2: #{tpu_custom_call.1} parent=1 // pred_check
      _
    $region3: #{tpu_custom_call.1} parent=1 // pred_check_branch
      %14 = sbr.rel (0) target = $region5
    $region4: #{tpu_custom_call.1} parent=1 // pred_region
      _
    $region5: #{tpu_custom_call.1} parent=1 // pred_fallthru
      _
    // Predicated region
    $region6: #{tpu_custom_call.1} parent=1 // pred_check
      _
    $region7: #{tpu_custom_call.1} parent=1 // pred_check_branch
      %16 = sbr.rel (0) target = $region9
    $region8: #{tpu_custom_call.1} parent=1 // pred_region
      _
    $region9: #{tpu_custom_call.1} parent=1 // pred_fallthru
      _
    // Predicated region
    $region10: #{tpu_custom_call.1} parent=1 // pred_check
      _
    $region11: #{tpu_custom_call.1} parent=1 // pred_check_branch
      %18 = sbr.rel (0) target = $region13
    $region12: #{tpu_custom_call.1} parent=1 // pred_region
      _
    $region13: #{tpu_custom_call.1} parent=1 // pred_fallthru
      _
    // Predicated region
    $region14: #{tpu_custom_call.1} parent=1 // pred_check
      _
    $region15: #{tpu_custom_call.1} parent=1 // pred_check_branch
      %20 = sbr.rel (0) target = $region17
    $region16: #{tpu_custom_call.1} parent=1 // pred_region
      _
    $region17: #{tpu_custom_call.1} parent=1 // pred_fallthru
      _
    // Predicated region
    $region18: #{tpu_custom_call.1} parent=1 // pred_check
      _
    $region19: #{tpu_custom_call.1} parent=1 // pred_check_branch
      %22 = sbr.rel (0) target = $region21
    $region20: #{tpu_custom_call.1} parent=1 // pred_region
      _
    $region21: #{tpu_custom_call.1} parent=1 // pred_fallthru
      _
    // Predicated region
    $region22: #{tpu_custom_call.1} parent=1 // pred_check
      _
    $region23: #{tpu_custom_call.1} parent=1 // pred_check_branch
      %24 = sbr.rel (0) target = $region25
    $region24: #{tpu_custom_call.1} parent=1 // pred_region
      _
    $region25: #{tpu_custom_call.1} parent=1 // pred_fallthru
      _
    // Predicated region
    $region26: #{tpu_custom_call.1} parent=1 // pred_check
      _
    $region27: #{tpu_custom_call.1} parent=1 // pred_check_branch
      %26 = sbr.rel (0) target = $region29
    $region28: #{tpu_custom_call.1} parent=1 // pred_region
      _
    $region29: #{tpu_custom_call.1} parent=1 // pred_fallthru
      _
    %v28 = vld [vmem:[%s0] sm:$0x7]
    %v29 = vld [vmem:[%s1] sm:$0xff]
    %v30 = vld [vmem:[%s1 + $0x8] sm:$0xff]
    %v31 = vld [vmem:[%s1 + $0x10] sm:$0xff]
    %v32 = vld [vmem:[%s1 + $0x18] sm:$0xff]
    %34 = vset.pattern.permute.xlu0 0
    %35 = vperm.xlu0 %34, %v29
    %v36 = vpop.permute.xlu0 %35
    %39 = vset.pattern.permute.xlu0 0
    %40 = vperm.xlu0 %39, %v30
    %v41 = vpop.permute.xlu0 %40
    %44 = vset.pattern.permute.xlu0 0
    %45 = vperm.xlu0 %44, %v31
    %v46 = vpop.permute.xlu0 %45
    %49 = vset.pattern.permute.xlu0 0
    %50 = vperm.xlu0 %49, %v32
    %v51 = vpop.permute.xlu0 %50
    %v53 = vlaneseq
    %v54 = vshrl.u32 %v53, 7
    %v55 = vsub.s32 0, %v54
    %v56 = vrot.slane %v28, %v55
    %v57 = vmul.f32 %v36, %v56
    %v58 = vmul.f32 %v41, %v56
    %v59 = vmul.f32 %v46, %v56
    %v60 = vmul.f32 %v51, %v56
    %61 = vset.pattern.permute.xlu0 1
    %62 = vperm.xlu0 %61, %v29
    %v63 = vpop.permute.xlu0 %62
    %65 = vset.pattern.permute.xlu0 1
    %66 = vperm.xlu0 %65, %v30
    %v67 = vpop.permute.xlu0 %66
    %69 = vset.pattern.permute.xlu0 1
    %70 = vperm.xlu0 %69, %v31
    %v71 = vpop.permute.xlu0 %70
    %73 = vset.pattern.permute.xlu0 1
    %74 = vperm.xlu0 %73, %v32
    %v75 = vpop.permute.xlu0 %74
    %v77 = vlaneseq
    %v78 = vshrl.u32 %v77, 7
    %v79 = vsub.s32 1, %v78
    %v80 = vrot.slane %v28, %v79
    %v81 = vmul.f32 %v63, %v80
    %v82 = vmul.f32 %v67, %v80
    %v83 = vmul.f32 %v71, %v80
    %v84 = vmul.f32 %v75, %v80
    %v85 = vadd.f32 %v57, %v81
    %v86 = vadd.f32 %v58, %v82
    %v87 = vadd.f32 %v59, %v83
    %v88 = vadd.f32 %v60, %v84
    %v89 = vld [vmem:[%s2] sm:$0xff]
    %v90 = vld [vmem:[%s2 + $0x8] sm:$0xff]
    %v91 = vld [vmem:[%s2 + $0x10] sm:$0xff]
    %v92 = vld [vmem:[%s2 + $0x18] sm:$0xff]
    %94 = vset.pattern.permute.xlu0 0
    %95 = vperm.xlu0 %94, %v89
    %v96 = vpop.permute.xlu0 %95
    %99 = vset.pattern.permute.xlu0 0
    %100 = vperm.xlu0 %99, %v90
    %v101 = vpop.permute.xlu0 %100
    %104 = vset.pattern.permute.xlu0 0
    %105 = vperm.xlu0 %104, %v91
    %v106 = vpop.permute.xlu0 %105
    %109 = vset.pattern.permute.xlu0 0
    %110 = vperm.xlu0 %109, %v92
    %v111 = vpop.permute.xlu0 %110
    %v113 = vadd.f32 %v85, %v96
    %v114 = vadd.f32 %v86, %v101
    %v115 = vadd.f32 %v87, %v106
    %v116 = vadd.f32 %v88, %v111
    %v117 = vmax.f32 %v113, 0.0
    %v118 = vmax.f32 %v114, 0.0
    %v119 = vmax.f32 %v115, 0.0
    %v120 = vmax.f32 %v116, 0.0
    %v121 = vld [vmem:[%s3] sm:$0xf]
    %v122 = vld [vmem:[%s3 + $0x4] sm:$0xf]
    %v123 = vld [vmem:[%s3 + $0x8] sm:$0xf]
    %v124 = vld [vmem:[%s3 + $0xc] sm:$0xf]
    %v125 = vpack.c.bf16 %v118, %v117
    %v126 = vpack.c.bf16 %v120, %v119
    %v127 = vld [vmem:[%s4] sm:$0xff]
    %v128 = vld [vmem:[%s4 + $0x8] sm:$0xff]
    %v129 = vld [vmem:[%s4 + $0x10] sm:$0xff]
    %v130 = vld [vmem:[%s4 + $0x18] sm:$0xff]
    %132 = vset.pattern.permute.xlu0 0
    %133 = vperm.xlu0 %132, %v127
    %v134 = vpop.permute.xlu0 %133
    %137 = vset.pattern.permute.xlu0 0
    %138 = vperm.xlu0 %137, %v128
    %v139 = vpop.permute.xlu0 %138
    %142 = vset.pattern.permute.xlu0 0
    %143 = vperm.xlu0 %142, %v129
    %v144 = vpop.permute.xlu0 %143
    %147 = vset.pattern.permute.xlu0 0
    %148 = vperm.xlu0 %147, %v130
    %v149 = vpop.permute.xlu0 %148
    %v155 = vunpack.c.l.b16 %v121
    %v156 = vunpack.c.l.b16 %v122
    %v157 = vunpack.c.l.b16 %v123
    %v158 = vunpack.c.l.b16 %v124
    %v159 = vpack.c.b16 %v156, %v155
    %v160 = vpack.c.b16 %v158, %v157
    %vm161 = vcmask 261120
    %v163 = vsel %vm161, %v159, 0
    %v166 = vsel %vm161, %v160, 0
    %168 = vmatprep.subr.bf16.mxu0 0
    %169 = vmatpush1.bf16.msra.mxu0 %v125
    %170 = vmatprep.subr.bf16.mxu0 0
    %171 = vmatpush1.bf16.msra.mxu0 %v126
    %172 = vmatprep.subr.bf16.mxu0 0
    %173 = vmatpush1.bf16.msra.mxu0 0
    %174 = vmatprep.subr.bf16.mxu0 0
    %175 = vmatpush1.bf16.msra.mxu0 0
    %176 = vmatprep.subr.bf16.mxu0 0
    %177 = vmatpush1.bf16.msra.mxu0 0
    %178 = vmatprep.subr.bf16.mxu0 0
    %179 = vmatpush1.bf16.msra.mxu0 0
    %180 = vmatprep.subr.bf16.mxu0 0
    %181 = vmatpush1.bf16.msra.mxu0 0
    %182 = vmatprep.subr.bf16.mxu0 0
    %183 = vmatpush1.bf16.msra.mxu0 0
    %184 = vmatprep.subr.bf16.mxu0 0
    %185 = vmatpush1.bf16.msra.mxu0 0
    %186 = vmatprep.subr.bf16.mxu0 0
    %187 = vmatpush1.bf16.msra.mxu0 0
    %188 = vmatprep.subr.bf16.mxu0 0
    %189 = vmatpush1.bf16.msra.mxu0 0
    %190 = vmatprep.subr.bf16.mxu0 0
    %191 = vmatpush1.bf16.msra.mxu0 0
    %192 = vmatprep.subr.bf16.mxu0 0
    %193 = vmatpush1.bf16.msra.mxu0 0
    %194 = vmatprep.subr.bf16.mxu0 0
    %195 = vmatpush1.bf16.msra.mxu0 0
    %196 = vmatprep.subr.bf16.mxu0 0
    %197 = vmatpush1.bf16.msra.mxu0 0
    %198 = vmatprep.subr.bf16.mxu0 0
    %199 = vmatpush1.bf16.msra.mxu0 0
    %200 = vmatprep.mubr.bf16.mxu0 0
    %201 = vmatmul.mubr.bf16.gmra.mrb[0].mxu0 %v163
    %v202 = vpop.f32.mrb[0].mxu0
    %v203 = vadd.f32 %v134, %v202
    %v204 = vpop.f32.mrb[0].mxu0
    %v205 = vpop.f32.mrb[0].mxu0
    %v206 = vadd.f32 %v139, %v205
    %v207 = vpop.f32.mrb[0].mxu0
    %208 = vmatprep.mubr.bf16.mxu0 0
    %209 = vmatmul.mubr.bf16.gmra.mrb[0].mxu0 %v166
    %v210 = vpop.f32.mrb[0].mxu0
    %v211 = vadd.f32 %v144, %v210
    %v212 = vpop.f32.mrb[0].mxu0
    %v213 = vpop.f32.mrb[0].mxu0
    %v214 = vadd.f32 %v149, %v213
    %v215 = vpop.f32.mrb[0].mxu0
    %216 = vdwg.mxu0
    %v217 = vmax.f32 %v203, 0.0
    %v218 = vmax.f32 %v206, 0.0
    %v219 = vmax.f32 %v211, 0.0
    %v220 = vmax.f32 %v214, 0.0
    %v221 = vcvt.f32.s32.to.zero.pseudo %v28
    %v222 = vlaneseq
    %v223 = vshrl.u32 %v222, 7
    %v224 = vadd.s32 %v223, 8
    %v225 = vlaneseq
    %v226 = vshrl.u32 %v225, 7
    %v227 = vsub.s32 2, %v226
    %v228 = vrot.slane %v221, %v227
    %vm229 = vcmp.eq.s32.totalorder %v223, %v228
    %vm230 = vcmp.eq.s32.totalorder %v224, %v228
    %v231 = vsel %vm229, 1, 0
    %v232 = vsel %vm230, 1, 0
    %v233 = vcvt.s32.f32 %v231
    %v234 = vcvt.s32.f32 %v232
    %v235 = vpack.c.bf16 %v218, %v217
    %v236 = vpack.c.bf16 %v220, %v219
    %v237 = vpack.c.bf16 %v234, %v233
    %v238 = vld [vmem:[%s5] sm:$0x3]
    %v239 = vld [vmem:[%s6] sm:$0xf]
    %241 = vset.pattern.permute.xlu0 0
    %242 = vperm.xlu0 %241, %v239
    %v243 = vpop.permute.xlu0 %242
    %vm245 = vcmask 392192
    %v247 = vsel %vm245, %v238, 0
    %249 = vmatprep.subr.bf16.mxu0 0
    %250 = vmatpush1.bf16.msra.mxu0 %v235
    %251 = vmatprep.subr.bf16.mxu0 0
    %252 = vmatpush1.bf16.msra.mxu0 %v236
    %253 = vmatprep.subr.bf16.mxu0 0
    %254 = vmatpush1.bf16.msra.mxu0 %v237
    %255 = vmatprep.subr.bf16.mxu0 0
    %256 = vmatpush1.bf16.msra.mxu0 0
    %257 = vmatprep.subr.bf16.mxu0 0
    %258 = vmatpush1.bf16.msra.mxu0 0
    %259 = vmatprep.subr.bf16.mxu0 0
    %260 = vmatpush1.bf16.msra.mxu0 0
    %261 = vmatprep.subr.bf16.mxu0 0
    %262 = vmatpush1.bf16.msra.mxu0 0
    %263 = vmatprep.subr.bf16.mxu0 0
    %264 = vmatpush1.bf16.msra.mxu0 0
    %265 = vmatprep.subr.bf16.mxu0 0
    %266 = vmatpush1.bf16.msra.mxu0 0
    %267 = vmatprep.subr.bf16.mxu0 0
    %268 = vmatpush1.bf16.msra.mxu0 0
    %269 = vmatprep.subr.bf16.mxu0 0
    %270 = vmatpush1.bf16.msra.mxu0 0
    %271 = vmatprep.subr.bf16.mxu0 0
    %272 = vmatpush1.bf16.msra.mxu0 0
    %273 = vmatprep.subr.bf16.mxu0 0
    %274 = vmatpush1.bf16.msra.mxu0 0
    %275 = vmatprep.subr.bf16.mxu0 0
    %276 = vmatpush1.bf16.msra.mxu0 0
    %277 = vmatprep.subr.bf16.mxu0 0
    %278 = vmatpush1.bf16.msra.mxu0 0
    %279 = vmatprep.subr.bf16.mxu0 0
    %280 = vmatpush1.bf16.msra.mxu0 0
    %281 = vmatprep.mubr.bf16.mxu0 0
    %282 = vmatmul.mubr.bf16.gmra.mrb[0].mxu0 %v247
    %v283 = vpop.f32.mrb[0].mxu0
    %v284 = vadd.f32 %v243, %v283
    %v285 = vpop.f32.mrb[0].mxu0
    %v286 = vpop.f32.mrb[0].mxu0
    %v287 = vpop.f32.mrb[0].mxu0
    %288 = vdwg.mxu0
    %vm289 = vcmask 60416
    %290 = vst.msk [vmem:[#allocation2] sm:$0xf] %vm289, %v284
    // Predicated region
    $region30: #{tpu_custom_call.1} parent=1 // pred_check
      _
    $region31: #{tpu_custom_call.1} parent=1 // pred_check_branch
      %292 = sbr.rel (0) target = $region33
    $region32: #{tpu_custom_call.1} parent=1 // pred_region
      %s294 = ssub.s32 64, 64
      %295 = vsyncadd [#allocation3], %s294
      %s297 = sshll.u32 [#allocation2], 4
      %s298 = int_to_ptr.vmem [resolvable:$true] %s297
      %300 = dma.vmem_to_hbm [thread:$0]  %s298, 64, %s7, [#allocation3]
    $region33: #{tpu_custom_call.1} parent=1 // pred_fallthru
      _
    // Predicated region
    $region34: #{tpu_custom_call.1} parent=1 // pred_check
      _
    $region35: #{tpu_custom_call.1} parent=1 // pred_check_branch
      %302 = sbr.rel (0) target = $region37
    $region36: #{tpu_custom_call.1} parent=1 // pred_region
      %303 = dma.done [#allocation3], 64
    $region37: #{tpu_custom_call.1} parent=1 // pred_fallthru
      _
    %304 = vsyncpa [#allocation3], 1

</llo_original>
